<compile_context>
chip_gen: v6e
topology: v6e:2x2x1
jax: 0.10.0
libtpu: 0.0.40
codegen_flags: <defaults>
</compile_context>

<pallas_src>
import functools

import jax
import jax.numpy as jnp
from jax import lax
from jax.experimental import pallas as pl
from jax.experimental.pallas import tpu as pltpu

_MiB = 1024 * 1024


def _round_up(n, m):
    return (n + m - 1) // m * m


def _floor_to(n, m):
    return max(m, n // m * m)


def _sublane_multiple(dtype):
    # Minimum second-minor tile height: 8 rows (f32), 16 (bf16), 32 (int8/fp8).
    return max(8, 32 // jnp.dtype(dtype).itemsize)


def _tpu_vmem_capacity():
    try:
        cap = getattr(pltpu.get_tpu_info(), "vmem_capacity_bytes", 0)
        if cap:
            return int(cap)
    except Exception:
        pass
    return 0  # unknown generation


def _listnets_kernel(x_ref, w_ref, b_ref, o_ref, *, n_d_steps):
    """One grid step of out[0, j*tkk:(j+1)*tkk] (+)= x_chunk @ W_tile^T (+ bias).

    x_ref : (1, td)    current D-chunk of flatten(x) (td == D on the fast path)
    w_ref : (tkk, td)  lane-dense stacked weight tile, native dtype
    b_ref : (1, tkk)   biases        o_ref : (1, tkk)  f32 output block
    Grid = (K tiles, D tiles); the D (reduction) axis is last.
    """
    acc = lax.dot_general(
        x_ref[...], w_ref[...],
        dimension_numbers=(((1,), (1,)), ((), ())),   # contract D: x @ W^T
        preferred_element_type=jnp.float32,
    )
    if n_d_steps == 1:
        # Single reduction step: one MXU mat-vec + bias add, no revisit of o_ref.
        o_ref[...] = acc + b_ref[...].astype(jnp.float32)
    else:
        k = pl.program_id(1)

        @pl.when(k == 0)
        def _():
            # o_ref is resident across the D axis: use it as the accumulator,
            # seeded with the bias (no VMEM scratch, no epilogue add).
            o_ref[...] = b_ref[...].astype(o_ref.dtype)

        o_ref[...] += acc


def list_of_networks_forward(x, W, b, output_shape, *,
                             single_block_max_bytes=1 * _MiB,
                             w_tile_bytes=None,
                             k_tile=None, d_tile=None,
                             core_parallel_k=False):
    """x: any-shape input (flattened, like the module).
    W: [K, D] stacked per-network weights (row k = nn.Linear(D, 1).weight of net k),
       kept in its native dtype (bf16 is streamed as bf16, f32 accumulation).
    b: [K] stacked biases.
    Returns a float32 array of shape (-1, *output_shape), matching the module."""
    K, D = W.shape
    assert b.shape == (K,), "need exactly one bias per network"
    x_flat = x.reshape(1, -1)
    assert x_flat.shape[1] == D, "flatten(x) must match the networks' input size"
    if x_flat.dtype != W.dtype:
        x_flat = x_flat.astype(W.dtype)           # x is tiny; W is never copied/cast
    b_row = b.reshape(1, K)

    itemsize = jnp.dtype(W.dtype).itemsize
    w_bytes = K * D * itemsize
    row_bytes = D * itemsize                      # one contiguous W row in HBM
    x_bytes = D * itemsize

    # ---- generation-aware VMEM budget --------------------------------------
    vmem_cap = _tpu_vmem_capacity()
    if vmem_cap:
        vmem_limit = min(96 * _MiB, (vmem_cap * 3) // 4)   # 96 MiB v5e/v6e, 48 MiB v7x
        if w_tile_bytes is None:
            w_tile_bytes = 6 * _MiB if vmem_cap <= 64 * _MiB else 8 * _MiB
    else:
        vmem_limit = 48 * _MiB                             # safe on every generation
        if w_tile_bytes is None:
            w_tile_bytes = 6 * _MiB
    # W (and x) are double-buffered by the pipeline; leave room for out/bias.
    w_tile_budget = max(128 * 1024,
                        min(w_tile_bytes, (vmem_limit - 2 * x_bytes - 2 * _MiB) // 2))

    # ---- tile selection -----------------------------------------------------
    if k_tile is not None or d_tile is not None:
        # User-specified tiles, sanitized to layout-safe multiples (dtype-aware:
        # a 128-multiple satisfies bf16/int8 sublane minima and gives lane-dense
        # unmasked output stores; anything >= the full dim collapses to it).
        if k_tile is None or _round_up(k_tile, 128) >= K:
            tkk = K
        else:
            tkk = _round_up(k_tile, 128)
        if d_tile is None or _round_up(d_tile, 128) >= D:
            td = D
        else:
            td = _round_up(d_tile, 128)
    elif w_bytes <= single_block_max_bytes:
        tkk, td = K, D                                     # whole GEMV in one block
    elif min(K, 128) * row_bytes <= w_tile_budget:
        # Preferred: full-D W tiles -> each tile DMA is fully contiguous rows and
        # there is no reduction loop.
        td = D
        rows = w_tile_budget // row_bytes
        tkk = K if rows >= K else _floor_to(rows, 128)
        if K > 128:
            # Keep >= 2 K tiles: DMA/compute overlap + v7x two-TensorCore split.
            tkk = min(tkk, max(128, (K // 2) // 128 * 128))
    else:
        # Very large D: even a minimum-height full-D tile does not fit, so tile
        # the reduction dimension as well (accumulator path).
        tkk = K if K <= 256 else 256
        td = min(_floor_to(w_tile_budget // (tkk * itemsize), 128),
                 _round_up(D, 128))

    # ---- pad D only if the reduction dimension is actually tiled ------------
    if td >= D:
        td, n_d = D, 1
    else:
        Dp = _round_up(D, td)
        n_d = Dp // td
        if Dp != D:
            # Zero padding along D is mathematically inert for W @ x + b.
            x_flat = jnp.pad(x_flat, ((0, 0), (0, Dp - D)))
            W = jnp.pad(W, ((0, 0), (0, Dp - D)))
    n_k = pl.cdiv(K, tkk)        # ragged K: boundary blocks are masked by Pallas

    kernel = functools.partial(_listnets_kernel, n_d_steps=int(n_d))
    k_sem = pltpu.CORE_PARALLEL if core_parallel_k else "parallel"   # v7x: 2-TC split
    d_sem = "arbitrary" if n_d > 1 else "parallel"

    out = pl.pallas_call(
        kernel,
        out_shape=jax.ShapeDtypeStruct((1, K), jnp.float32),
        grid_spec=pltpu.PrefetchScalarGridSpec(
            num_scalar_prefetch=0,
            grid=(int(n_k), int(n_d)),                           # reduction axis last
            in_specs=[
                pl.BlockSpec((1, td), lambda j, k: (0, k)),      # x chunk (fetched once when n_d==1)
                pl.BlockSpec((tkk, td), lambda j, k: (j, k)),    # W tile: contiguous rows when td==D
                pl.BlockSpec((1, tkk), lambda j, k: (0, j)),     # bias
            ],
            out_specs=pl.BlockSpec((1, tkk), lambda j, k: (0, j)),
        ),
        compiler_params=pltpu.CompilerParams(
            dimension_semantics=(k_sem, d_sem),
            vmem_limit_bytes=int(vmem_limit),
        ),
    )(x_flat, W, b_row)

    return out[0].reshape((-1, *output_shape))


def _reference(x, W, b, output_shape):
    xf = x.reshape(-1).astype(jnp.float32)
    y = (jnp.dot(W.astype(jnp.float32), xf, precision=jax.lax.Precision.HIGHEST)
         + b.astype(jnp.float32))
    return y.reshape((-1, *output_shape))


if __name__ == "__main__":
    key = jax.random.PRNGKey(0)
    keys = jax.random.split(key, 12)

    # ---- Check 1: demo shapes, f32, single-block fast path (256 KiB W) ------
    N, C, H, Wd = 2, 4, 16, 16
    D = N * C * H * Wd                                   # 2048
    K1, os1 = 32, (4, 4)
    x1 = jax.random.normal(keys[0], (N, C, H, Wd), dtype=jnp.float32)
    W1 = jax.random.normal(keys[1], (K1, D), dtype=jnp.float32) * 0.02
    b1 = jax.random.normal(keys[2], (K1,), dtype=jnp.float32) * 0.1
    out1 = jax.block_until_ready(list_of_networks_forward(x1, W1, b1, os1))
    ref1 = _reference(x1, W1, b1, os1)
    assert out1.shape == (K1 // (os1[0] * os1[1]), *os1)
    assert jnp.allclose(out1, ref1, atol=2e-2, rtol=2e-2)

    # ---- Check 2: bf16 W streamed natively, heuristic full-D multi-K-tile ---
    K2, os2 = 768, (8, 8)                                # 3 MiB W -> 2 pipelined tiles
    x2 = jax.random.normal(keys[3], (N, C, H, Wd), dtype=jnp.bfloat16)
    W2 = (jax.random.normal(keys[4], (K2, D), dtype=jnp.bfloat16) * 0.02).astype(jnp.bfloat16)
    b2 = (jax.random.normal(keys[5], (K2,), dtype=jnp.bfloat16) * 0.1).astype(jnp.bfloat16)
    out2 = jax.block_until_ready(list_of_networks_forward(x2, W2, b2, os2))
    ref2 = _reference(x2, W2, b2, os2)
    assert out2.shape == (K2 // (os2[0] * os2[1]), *os2)
    assert jnp.allclose(out2, ref2, atol=2e-2, rtol=2e-2)

    # ---- Check 3: ragged D (600), single-block path, no padding needed ------
    x3 = jax.random.normal(keys[6], (2, 3, 10, 10), dtype=jnp.float32)   # D = 600
    K3, os3 = 20, (4, 5)
    W3 = jax.random.normal(keys[7], (K3, 600), dtype=jnp.float32) * 0.02
    b3 = jax.random.normal(keys[8], (K3,), dtype=jnp.float32) * 0.1
    out3 = jax.block_until_ready(list_of_networks_forward(x3, W3, b3, os3))
    ref3 = _reference(x3, W3, b3, os3)
    assert out3.shape == (1, *os3)
    assert jnp.allclose(out3, ref3, atol=2e-2, rtol=2e-2)

    # ---- Check 4: explicit tiles -> ragged K blocks + tiled/padded D path ---
    x4 = jax.random.normal(keys[9], (2, 3, 10, 10), dtype=jnp.float32)   # D = 600
    K4, os4 = 300, (10, 10)
    W4 = jax.random.normal(keys[10], (K4, 600), dtype=jnp.float32) * 0.02
    b4 = jax.random.normal(keys[11], (K4,), dtype=jnp.float32) * 0.1
    out4 = jax.block_until_ready(
        list_of_networks_forward(x4, W4, b4, os4, k_tile=128, d_tile=256))
    ref4 = _reference(x4, W4, b4, os4)
    assert out4.shape == (3, *os4)
    assert jnp.allclose(out4, ref4, atol=2e-2, rtol=2e-2)

    print("KERNEL_OK")
</pallas_src>

<mosaic_0001>
module attributes {stable_mosaic.version = 11 : i64} {
  func.func @_listnets_kernel(%arg0: i32, %arg1: i32, %arg2: memref<1x2048xf32, #tpu.memory_space<vmem>>, %arg3: memref<32x2048xf32, #tpu.memory_space<vmem>>, %arg4: memref<1x32xf32, #tpu.memory_space<vmem>>, %arg5: memref<1x32xf32, #tpu.memory_space<vmem>>) attributes {dimension_semantics = [#tpu.dimension_semantics<parallel>, #tpu.dimension_semantics<parallel>], iteration_bounds = array<i64: 1, 1>, scalar_prefetch = 0 : i64, scratch_operands = 0 : i64, tpu.core_type = #tpu.core_type<tc>, window_params = [{transform_indices = @transform_0, window_bounds = array<i64: 1, 2048>}, {transform_indices = @transform_1, window_bounds = array<i64: 32, 2048>}, {transform_indices = @transform_2, window_bounds = array<i64: 1, 32>}, {transform_indices = @transform_3, window_bounds = array<i64: 1, 32>}]} {
    %c0 = arith.constant 0 : index
    %c0_0 = arith.constant 0 : index
    %0 = vector.load %arg2[%c0, %c0_0] : memref<1x2048xf32, #tpu.memory_space<vmem>>, vector<1x2048xf32>
    %c0_1 = arith.constant 0 : index
    %c0_2 = arith.constant 0 : index
    %1 = vector.load %arg3[%c0_1, %c0_2] : memref<32x2048xf32, #tpu.memory_space<vmem>>, vector<32x2048xf32>
    %cst = arith.constant dense<0.000000e+00> : vector<1x32xf32>
    %2 = tpu.matmul %0, %1, %cst {dimension_numbers = #tpu.dot_dimension_numbers<[1], [1], [0], [0], [0, 0, 1, 0], [], []>} : vector<1x2048xf32>, vector<32x2048xf32>, vector<1x32xf32> -> vector<1x32xf32>
    %c0_3 = arith.constant 0 : index
    %c0_4 = arith.constant 0 : index
    %3 = vector.load %arg4[%c0_3, %c0_4] : memref<1x32xf32, #tpu.memory_space<vmem>>, vector<1x32xf32>
    %4 = arith.addf %2, %3 : vector<1x32xf32>
    %c0_5 = arith.constant 0 : index
    %c0_6 = arith.constant 0 : index
    %5 = vector.load %arg5[%c0_5, %c0_6] : memref<1x32xf32, #tpu.memory_space<vmem>>, vector<1x32xf32>
    tpu.vector_store %arg5[%c0_5, %c0_6], %4 {strides = array<i32>} : memref<1x32xf32, #tpu.memory_space<vmem>>, vector<1x32xf32>,
    return
  }
  func.func @transform_0(%arg0: i32, %arg1: i32) -> (i32, i32) {
    %c0_i32 = arith.constant 0 : i32
    %c0_i32_0 = arith.constant 0 : i32
    return %c0_i32, %arg1 : i32, i32
  }
  func.func @transform_1(%arg0: i32, %arg1: i32) -> (i32, i32) {
    %c0_i32 = arith.constant 0 : i32
    return %arg0, %arg1 : i32, i32
  }
  func.func @transform_2(%arg0: i32, %arg1: i32) -> (i32, i32) {
    %c0_i32 = arith.constant 0 : i32
    %c0_i32_0 = arith.constant 0 : i32
    return %c0_i32, %arg0 : i32, i32
  }
  func.func @transform_3(%arg0: i32, %arg1: i32) -> (i32, i32) {
    %c0_i32 = arith.constant 0 : i32
    %c0_i32_0 = arith.constant 0 : i32
    return %c0_i32, %arg0 : i32, i32
  }
}

</mosaic_0001>

<llo_original>
// kernel: tpu_custom_call.1
$region0: #{tpu_custom_call.1}
  #allocation0 [shape = 'u32[]', space=smem, size = 0x4, offset = 0x4, fixed_abs, tag = 'smem constant byte address 0x4 - core index']
  #allocation1 [shape = 'u32[144,128]{1,0:T(1,128)}', space=vmem, size = 0x12000, scoped, tag = 'internal scratch']
  %s0 = inlined_call_operand.hbm [shape: f32[1,2048], index: 0, kind: input, shape index: {}]
  %s1 = inlined_call_operand.hbm [shape: f32[32,2048], index: 1, kind: input, shape index: {}]
  %s2 = inlined_call_operand.vmem [shape: f32[1,32], index: 2, kind: input, shape index: {}]
  %s3 = inlined_call_operand.hbm [shape: f32[1,32], index: 3, kind: output, shape index: {}]
  %s4 = sld [smem:[#allocation0]]
  $region30: #{tpu_custom_call.1} parent=0
    _
  %s6 = ssub.s32 1, %s4
  %s7 = scalar_select 0, %s6, %s4
  $region1: #{tpu_custom_call.1} parent=0
    #allocation2 [shape = 'u8[8192]{0}', space=vmem, size = 0x2000, scoped, tag = 'input window, operand 0, single buffered']
    #allocation3 [shape = 's32[1]{0}', space=sflag, size = 0x4, scoped, tag = 'scoped memory for tpu_custom_call.1']
    #allocation4 [shape = 's32[1]{0}', space=sflag, size = 0x4, scoped, tag = 'scoped memory for tpu_custom_call.1']
    #allocation5 [shape = 'u8[262144]{0}', space=vmem, size = 0x40000, scoped, tag = 'input window, operand 1, single buffered']
    #allocation6 [shape = 's32[1]{0}', space=sflag, size = 0x4, scoped, tag = 'scoped memory for tpu_custom_call.1']
    #allocation7 [shape = 'u8[512]{0}', space=vmem, size = 0x400, scoped, tag = 'output window, operand 0, single buffered']
    %8 = vsyncpa [#allocation3], 0
    %9 = vsyncpa [#allocation6], 0
    %10 = vsyncpa [#allocation4], 0
    // Predicated region
    $region2: #{tpu_custom_call.1} parent=1 // pred_check
      _
    $region3: #{tpu_custom_call.1} parent=1 // pred_check_branch
      %12 = sbr.rel (0) target = $region5
    $region4: #{tpu_custom_call.1} parent=1 // pred_region
      %s14 = ssub.s32 256, 256
      %15 = vsyncadd [#allocation3], %s14
      %s17 = sshll.u32 [#allocation2], 4
      %s18 = int_to_ptr.vmem [resolvable:$true] %s17
      %20 = dma.hbm_to_vmem [thread:$0]  %s0, 256, %s18, [#allocation3]
    $region5: #{tpu_custom_call.1} parent=1 // pred_fallthru
      _
    // Predicated region
    $region6: #{tpu_custom_call.1} parent=1 // pred_check
      _
    $region7: #{tpu_custom_call.1} parent=1 // pred_check_branch
      %22 = sbr.rel (0) target = $region9
    $region8: #{tpu_custom_call.1} parent=1 // pred_region
      %s24 = ssub.s32 8192, 8192
      %25 = vsyncadd [#allocation6], %s24
      %s26 = sshll.u32 [#allocation5], 4
      %s27 = int_to_ptr.vmem [resolvable:$true] %s26
      %32 = dma.hbm_to_vmem [thread:$0]  %s1, 8192, %s27, [#allocation6], 2048, 2048, 128
    $region9: #{tpu_custom_call.1} parent=1 // pred_fallthru
      _
    // Predicated region
    $region10: #{tpu_custom_call.1} parent=1 // pred_check
      _
    $region11: #{tpu_custom_call.1} parent=1 // pred_check_branch
      %34 = sbr.rel (0) target = $region13
    $region12: #{tpu_custom_call.1} parent=1 // pred_region
      _
    $region13: #{tpu_custom_call.1} parent=1 // pred_fallthru
      _
    // Predicated region
    $region14: #{tpu_custom_call.1} parent=1 // pred_check
      _
    $region15: #{tpu_custom_call.1} parent=1 // pred_check_branch
      %36 = sbr.rel (0) target = $region17
    $region16: #{tpu_custom_call.1} parent=1 // pred_region
      %37 = dma.done [#allocation3], 256
    $region17: #{tpu_custom_call.1} parent=1 // pred_fallthru
      _
    // Predicated region
    $region18: #{tpu_custom_call.1} parent=1 // pred_check
      _
    $region19: #{tpu_custom_call.1} parent=1 // pred_check_branch
      %39 = sbr.rel (0) target = $region21
    $region20: #{tpu_custom_call.1} parent=1 // pred_region
      %40 = dma.done [#allocation6], 8192
    $region21: #{tpu_custom_call.1} parent=1 // pred_fallthru
      _
    %v41 = vld [vmem:[#allocation2] sm:$0xff]
    %v42 = vld [vmem:[#allocation2 + $0x8] sm:$0xff]
    %v43 = vld [vmem:[#allocation5] sm:$0xff]
    %v44 = vld [vmem:[#allocation5 + $0x8] sm:$0xff]
    %v45 = vld [vmem:[#allocation5 + $0x10] sm:$0xff]
    %v46 = vld [vmem:[#allocation5 + $0x18] sm:$0xff]
    %v47 = vld [vmem:[#allocation5 + $0x20] sm:$0xff]
    %v48 = vld [vmem:[#allocation5 + $0x28] sm:$0xff]
    %v49 = vld [vmem:[#allocation5 + $0x30] sm:$0xff]
    %v50 = vld [vmem:[#allocation5 + $0x38] sm:$0xff]
    %v51 = vld [vmem:[#allocation5 + $0x40] sm:$0xff]
    %v52 = vld [vmem:[#allocation5 + $0x48] sm:$0xff]
    %v53 = vld [vmem:[#allocation5 + $0x50] sm:$0xff]
    %v54 = vld [vmem:[#allocation5 + $0x58] sm:$0xff]
    %v55 = vld [vmem:[#allocation5 + $0x60] sm:$0xff]
    %v56 = vld [vmem:[#allocation5 + $0x68] sm:$0xff]
    %v57 = vld [vmem:[#allocation5 + $0x70] sm:$0xff]
    %v58 = vld [vmem:[#allocation5 + $0x78] sm:$0xff]
    %v59 = vld [vmem:[#allocation5 + $0x80] sm:$0xff]
    %v60 = vld [vmem:[#allocation5 + $0x88] sm:$0xff]
    %v61 = vld [vmem:[#allocation5 + $0x90] sm:$0xff]
    %v62 = vld [vmem:[#allocation5 + $0x98] sm:$0xff]
    %v63 = vld [vmem:[#allocation5 + $0xa0] sm:$0xff]
    %v64 = vld [vmem:[#allocation5 + $0xa8] sm:$0xff]
    %v65 = vld [vmem:[#allocation5 + $0xb0] sm:$0xff]
    %v66 = vld [vmem:[#allocation5 + $0xb8] sm:$0xff]
    %v67 = vld [vmem:[#allocation5 + $0xc0] sm:$0xff]
    %v68 = vld [vmem:[#allocation5 + $0xc8] sm:$0xff]
    %v69 = vld [vmem:[#allocation5 + $0xd0] sm:$0xff]
    %v70 = vld [vmem:[#allocation5 + $0xd8] sm:$0xff]
    %v71 = vld [vmem:[#allocation5 + $0xe0] sm:$0xff]
    %v72 = vld [vmem:[#allocation5 + $0xe8] sm:$0xff]
    %v73 = vld [vmem:[#allocation5 + $0xf0] sm:$0xff]
    %v74 = vld [vmem:[#allocation5 + $0xf8] sm:$0xff]
    %v75 = vld [vmem:[#allocation5 + $0x100] sm:$0xff]
    %v76 = vld [vmem:[#allocation5 + $0x108] sm:$0xff]
    %v77 = vld [vmem:[#allocation5 + $0x110] sm:$0xff]
    %v78 = vld [vmem:[#allocation5 + $0x118] sm:$0xff]
    %v79 = vld [vmem:[#allocation5 + $0x120] sm:$0xff]
    %v80 = vld [vmem:[#allocation5 + $0x128] sm:$0xff]
    %v81 = vld [vmem:[#allocation5 + $0x130] sm:$0xff]
    %v82 = vld [vmem:[#allocation5 + $0x138] sm:$0xff]
    %v83 = vld [vmem:[#allocation5 + $0x140] sm:$0xff]
    %v84 = vld [vmem:[#allocation5 + $0x148] sm:$0xff]
    %v85 = vld [vmem:[#allocation5 + $0x150] sm:$0xff]
    %v86 = vld [vmem:[#allocation5 + $0x158] sm:$0xff]
    %v87 = vld [vmem:[#allocation5 + $0x160] sm:$0xff]
    %v88 = vld [vmem:[#allocation5 + $0x168] sm:$0xff]
    %v89 = vld [vmem:[#allocation5 + $0x170] sm:$0xff]
    %v90 = vld [vmem:[#allocation5 + $0x178] sm:$0xff]
    %v91 = vld [vmem:[#allocation5 + $0x180] sm:$0xff]
    %v92 = vld [vmem:[#allocation5 + $0x188] sm:$0xff]
    %v93 = vld [vmem:[#allocation5 + $0x190] sm:$0xff]
    %v94 = vld [vmem:[#allocation5 + $0x198] sm:$0xff]
    %v95 = vld [vmem:[#allocation5 + $0x1a0] sm:$0xff]
    %v96 = vld [vmem:[#allocation5 + $0x1a8] sm:$0xff]
    %v97 = vld [vmem:[#allocation5 + $0x1b0] sm:$0xff]
    %v98 = vld [vmem:[#allocation5 + $0x1b8] sm:$0xff]
    %v99 = vld [vmem:[#allocation5 + $0x1c0] sm:$0xff]
    %v100 = vld [vmem:[#allocation5 + $0x1c8] sm:$0xff]
    %v101 = vld [vmem:[#allocation5 + $0x1d0] sm:$0xff]
    %v102 = vld [vmem:[#allocation5 + $0x1d8] sm:$0xff]
    %v103 = vld [vmem:[#allocation5 + $0x1e0] sm:$0xff]
    %v104 = vld [vmem:[#allocation5 + $0x1e8] sm:$0xff]
    %v105 = vld [vmem:[#allocation5 + $0x1f0] sm:$0xff]
    %v106 = vld [vmem:[#allocation5 + $0x1f8] sm:$0xff]
    %v107 = vld [vmem:[%s2] sm:$0x1]
    %v110 = vlaneseq
    %v111 = vshrl.u32 %v110, 7
    %v112 = vsub.s32 0, %v111
    %v113 = vrot.slane %v41, %v112
    %v114 = vlaneseq
    %v115 = vshrl.u32 %v114, 7
    %v116 = vsub.s32 1, %v115
    %v117 = vrot.slane %v41, %v116
    %v118 = vlaneseq
    %v119 = vshrl.u32 %v118, 7
    %v120 = vsub.s32 2, %v119
    %v121 = vrot.slane %v41, %v120
    %v122 = vlaneseq
    %v123 = vshrl.u32 %v122, 7
    %v124 = vsub.s32 3, %v123
    %v125 = vrot.slane %v41, %v124
    %v126 = vlaneseq
    %v127 = vshrl.u32 %v126, 7
    %v128 = vsub.s32 4, %v127
    %v129 = vrot.slane %v41, %v128
    %v130 = vlaneseq
    %v131 = vshrl.u32 %v130, 7
    %v132 = vsub.s32 5, %v131
    %v133 = vrot.slane %v41, %v132
    %v134 = vlaneseq
    %v135 = vshrl.u32 %v134, 7
    %v136 = vsub.s32 6, %v135
    %v137 = vrot.slane %v41, %v136
    %v138 = vlaneseq
    %v139 = vshrl.u32 %v138, 7
    %v140 = vsub.s32 7, %v139
    %v141 = vrot.slane %v41, %v140
    %v142 = vlaneseq
    %v143 = vshrl.u32 %v142, 7
    %v144 = vsub.s32 0, %v143
    %v145 = vrot.slane %v42, %v144
    %v146 = vlaneseq
    %v147 = vshrl.u32 %v146, 7
    %v148 = vsub.s32 1, %v147
    %v149 = vrot.slane %v42, %v148
    %v150 = vlaneseq
    %v151 = vshrl.u32 %v150, 7
    %v152 = vsub.s32 2, %v151
    %v153 = vrot.slane %v42, %v152
    %v154 = vlaneseq
    %v155 = vshrl.u32 %v154, 7
    %v156 = vsub.s32 3, %v155
    %v157 = vrot.slane %v42, %v156
    %v158 = vlaneseq
    %v159 = vshrl.u32 %v158, 7
    %v160 = vsub.s32 4, %v159
    %v161 = vrot.slane %v42, %v160
    %v162 = vlaneseq
    %v163 = vshrl.u32 %v162, 7
    %v164 = vsub.s32 5, %v163
    %v165 = vrot.slane %v42, %v164
    %v166 = vlaneseq
    %v167 = vshrl.u32 %v166, 7
    %v168 = vsub.s32 6, %v167
    %v169 = vrot.slane %v42, %v168
    %v170 = vlaneseq
    %v171 = vshrl.u32 %v170, 7
    %v172 = vsub.s32 7, %v171
    %v173 = vrot.slane %v42, %v172
    %190 = vmatprep.subr.mxu0 0.0
    %191 = vmatpush1.xpose.msra.mxu0 0.0
    %192 = vmatprep.subr.mxu0 0.0
    %193 = vmatpush1.xpose.msra.mxu0 0.0
    %194 = vmatprep.subr.mxu0 0.0
    %195 = vmatpush1.xpose.msra.mxu0 0.0
    %196 = vmatprep.subr.mxu0 0.0
    %197 = vmatpush1.xpose.msra.mxu0 0.0
    %198 = vmatprep.subr.mxu0 0.0
    %199 = vmatpush1.xpose.msra.mxu0 0.0
    %200 = vmatprep.subr.mxu0 0.0
    %201 = vmatpush1.xpose.msra.mxu0 0.0
    %202 = vmatprep.subr.mxu0 0.0
    %203 = vmatpush1.xpose.msra.mxu0 0.0
    %204 = vmatprep.subr.mxu0 0.0
    %205 = vmatpush1.xpose.msra.mxu0 0.0
    %206 = vmatprep.subr.mxu0 0.0
    %207 = vmatpush1.xpose.msra.mxu0 0.0
    %208 = vmatprep.subr.mxu0 0.0
    %209 = vmatpush1.xpose.msra.mxu0 0.0
    %210 = vmatprep.subr.mxu0 0.0
    %211 = vmatpush1.xpose.msra.mxu0 0.0
    %212 = vmatprep.subr.mxu0 0.0
    %213 = vmatpush1.xpose.msra.mxu0 0.0
    %214 = vmatprep.subr.mxu0 %v92
    %215 = vmatpush1.xpose.msra.mxu0 %v91
    %216 = vmatprep.subr.mxu0 %v76
    %217 = vmatpush1.xpose.msra.mxu0 %v75
    %218 = vmatprep.subr.mxu0 %v60
    %219 = vmatpush1.xpose.msra.mxu0 %v59
    %220 = vmatprep.subr.mxu0 %v44
    %221 = vmatpush1.xpose.msra.mxu0 %v43
    %222 = vmatprep.subr.mxu0 0.0
    %223 = vmatpush2.xpose.msra.mxu0 0.0
    %224 = vmatprep.subr.mxu0 0.0
    %225 = vmatpush2.xpose.msra.mxu0 0.0
    %226 = vmatprep.subr.mxu0 0.0
    %227 = vmatpush2.xpose.msra.mxu0 0.0
    %228 = vmatprep.subr.mxu0 0.0
    %229 = vmatpush2.xpose.msra.mxu0 0.0
    %230 = vmatprep.subr.mxu0 0.0
    %231 = vmatpush2.xpose.msra.mxu0 0.0
    %232 = vmatprep.subr.mxu0 0.0
    %233 = vmatpush2.xpose.msra.mxu0 0.0
    %234 = vmatprep.subr.mxu0 0.0
    %235 = vmatpush2.xpose.msra.mxu0 0.0
    %236 = vmatprep.subr.mxu0 0.0
    %237 = vmatpush2.xpose.msra.mxu0 0.0
    %238 = vmatprep.subr.mxu0 0.0
    %239 = vmatpush2.xpose.msra.mxu0 0.0
    %240 = vmatprep.subr.mxu0 0.0
    %241 = vmatpush2.xpose.msra.mxu0 0.0
    %242 = vmatprep.subr.mxu0 0.0
    %243 = vmatpush2.xpose.msra.mxu0 0.0
    %244 = vmatprep.subr.mxu0 0.0
    %245 = vmatpush2.xpose.msra.mxu0 0.0
    %246 = vmatprep.subr.mxu0 0.0
    %247 = vmatpush2.xpose.msra.mxu0 0.0
    %248 = vmatprep.subr.mxu0 0.0
    %249 = vmatpush2.xpose.msra.mxu0 0.0
    %250 = vmatprep.subr.mxu0 0.0
    %251 = vmatpush2.xpose.msra.mxu0 0.0
    %252 = vmatprep.subr.mxu0 0.0
    %253 = vmatpush2.xpose.msra.mxu0 0.0
    %254 = vmatprep.mubr.f32.mxu0 %v117
    %255 = vmatmul.mubr.f32.gmra.mxu0 %v113
    %v256 = vpop.f32.mrf.mxu0
    %v257 = vadd.f32 %v107, %v256
    %v258 = vpop.f32.mrf.mxu0
    %259 = vdwg.mxu0
    %260 = vmatprep.subr.mxu0 0.0
    %261 = vmatpush1.xpose.msra.mxu0 0.0
    %262 = vmatprep.subr.mxu0 0.0
    %263 = vmatpush1.xpose.msra.mxu0 0.0
    %264 = vmatprep.subr.mxu0 0.0
    %265 = vmatpush1.xpose.msra.mxu0 0.0
    %266 = vmatprep.subr.mxu0 0.0
    %267 = vmatpush1.xpose.msra.mxu0 0.0
    %268 = vmatprep.subr.mxu0 0.0
    %269 = vmatpush1.xpose.msra.mxu0 0.0
    %270 = vmatprep.subr.mxu0 0.0
    %271 = vmatpush1.xpose.msra.mxu0 0.0
    %272 = vmatprep.subr.mxu0 0.0
    %273 = vmatpush1.xpose.msra.mxu0 0.0
    %274 = vmatprep.subr.mxu0 0.0
    %275 = vmatpush1.xpose.msra.mxu0 0.0
    %276 = vmatprep.subr.mxu0 0.0
    %277 = vmatpush1.xpose.msra.mxu0 0.0
    %278 = vmatprep.subr.mxu0 0.0
    %279 = vmatpush1.xpose.msra.mxu0 0.0
    %280 = vmatprep.subr.mxu0 0.0
    %281 = vmatpush1.xpose.msra.mxu0 0.0
    %282 = vmatprep.subr.mxu0 0.0
    %283 = vmatpush1.xpose.msra.mxu0 0.0
    %284 = vmatprep.subr.mxu0 %v94
    %285 = vmatpush1.xpose.msra.mxu0 %v93
    %286 = vmatprep.subr.mxu0 %v78
    %287 = vmatpush1.xpose.msra.mxu0 %v77
    %288 = vmatprep.subr.mxu0 %v62
    %289 = vmatpush1.xpose.msra.mxu0 %v61
    %290 = vmatprep.subr.mxu0 %v46
    %291 = vmatpush1.xpose.msra.mxu0 %v45
    %292 = vmatprep.subr.mxu0 0.0
    %293 = vmatpush2.xpose.msra.mxu0 0.0
    %294 = vmatprep.subr.mxu0 0.0
    %295 = vmatpush2.xpose.msra.mxu0 0.0
    %296 = vmatprep.subr.mxu0 0.0
    %297 = vmatpush2.xpose.msra.mxu0 0.0
    %298 = vmatprep.subr.mxu0 0.0
    %299 = vmatpush2.xpose.msra.mxu0 0.0
    %300 = vmatprep.subr.mxu0 0.0
    %301 = vmatpush2.xpose.msra.mxu0 0.0
    %302 = vmatprep.subr.mxu0 0.0
    %303 = vmatpush2.xpose.msra.mxu0 0.0
    %304 = vmatprep.subr.mxu0 0.0
    %305 = vmatpush2.xpose.msra.mxu0 0.0
    %306 = vmatprep.subr.mxu0 0.0
    %307 = vmatpush2.xpose.msra.mxu0 0.0
    %308 = vmatprep.subr.mxu0 0.0
    %309 = vmatpush2.xpose.msra.mxu0 0.0
    %310 = vmatprep.subr.mxu0 0.0
    %311 = vmatpush2.xpose.msra.mxu0 0.0
    %312 = vmatprep.subr.mxu0 0.0
    %313 = vmatpush2.xpose.msra.mxu0 0.0
    %314 = vmatprep.subr.mxu0 0.0
    %315 = vmatpush2.xpose.msra.mxu0 0.0
    %316 = vmatprep.subr.mxu0 0.0
    %317 = vmatpush2.xpose.msra.mxu0 0.0
    %318 = vmatprep.subr.mxu0 0.0
    %319 = vmatpush2.xpose.msra.mxu0 0.0
    %320 = vmatprep.subr.mxu0 0.0
    %321 = vmatpush2.xpose.msra.mxu0 0.0
    %322 = vmatprep.subr.mxu0 0.0
    %323 = vmatpush2.xpose.msra.mxu0 0.0
    %324 = vmatprep.mubr.f32.mxu0 %v125
    %325 = vmatmul.mubr.f32.gmra.mxu0 %v121
    %v326 = vpop.f32.mrf.mxu0
    %v327 = vadd.f32 %v257, %v326
    %v328 = vpop.f32.mrf.mxu0
    %329 = vdwg.mxu0
    %330 = vmatprep.subr.mxu0 0.0
    %331 = vmatpush1.xpose.msra.mxu0 0.0
    %332 = vmatprep.subr.mxu0 0.0
    %333 = vmatpush1.xpose.msra.mxu0 0.0
    %334 = vmatprep.subr.mxu0 0.0
    %335 = vmatpush1.xpose.msra.mxu0 0.0
    %336 = vmatprep.subr.mxu0 0.0
    %337 = vmatpush1.xpose.msra.mxu0 0.0
    %338 = vmatprep.subr.mxu0 0.0
    %339 = vmatpush1.xpose.msra.mxu0 0.0
    %340 = vmatprep.subr.mxu0 0.0
    %341 = vmatpush1.xpose.msra.mxu0 0.0
    %342 = vmatprep.subr.mxu0 0.0
    %343 = vmatpush1.xpose.msra.mxu0 0.0
    %344 = vmatprep.subr.mxu0 0.0
    %345 = vmatpush1.xpose.msra.mxu0 0.0
    %346 = vmatprep.subr.mxu0 0.0
    %347 = vmatpush1.xpose.msra.mxu0 0.0
    %348 = vmatprep.subr.mxu0 0.0
    %349 = vmatpush1.xpose.msra.mxu0 0.0
    %350 = vmatprep.subr.mxu0 0.0
    %351 = vmatpush1.xpose.msra.mxu0 0.0
    %352 = vmatprep.subr.mxu0 0.0
    %353 = vmatpush1.xpose.msra.mxu0 0.0
    %354 = vmatprep.subr.mxu0 %v96
    %355 = vmatpush1.xpose.msra.mxu0 %v95
    %356 = vmatprep.subr.mxu0 %v80
    %357 = vmatpush1.xpose.msra.mxu0 %v79
    %358 = vmatprep.subr.mxu0 %v64
    %359 = vmatpush1.xpose.msra.mxu0 %v63
    %360 = vmatprep.subr.mxu0 %v48
    %361 = vmatpush1.xpose.msra.mxu0 %v47
    %362 = vmatprep.subr.mxu0 0.0
    %363 = vmatpush2.xpose.msra.mxu0 0.0
    %364 = vmatprep.subr.mxu0 0.0
    %365 = vmatpush2.xpose.msra.mxu0 0.0
    %366 = vmatprep.subr.mxu0 0.0
    %367 = vmatpush2.xpose.msra.mxu0 0.0
    %368 = vmatprep.subr.mxu0 0.0
    %369 = vmatpush2.xpose.msra.mxu0 0.0
    %370 = vmatprep.subr.mxu0 0.0
    %371 = vmatpush2.xpose.msra.mxu0 0.0
    %372 = vmatprep.subr.mxu0 0.0
    %373 = vmatpush2.xpose.msra.mxu0 0.0
    %374 = vmatprep.subr.mxu0 0.0
    %375 = vmatpush2.xpose.msra.mxu0 0.0
    %376 = vmatprep.subr.mxu0 0.0
    %377 = vmatpush2.xpose.msra.mxu0 0.0
    %378 = vmatprep.subr.mxu0 0.0
    %379 = vmatpush2.xpose.msra.mxu0 0.0
    %380 = vmatprep.subr.mxu0 0.0
    %381 = vmatpush2.xpose.msra.mxu0 0.0
    %382 = vmatprep.subr.mxu0 0.0
    %383 = vmatpush2.xpose.msra.mxu0 0.0
    %384 = vmatprep.subr.mxu0 0.0
    %385 = vmatpush2.xpose.msra.mxu0 0.0
    %386 = vmatprep.subr.mxu0 0.0
    %387 = vmatpush2.xpose.msra.mxu0 0.0
    %388 = vmatprep.subr.mxu0 0.0
    %389 = vmatpush2.xpose.msra.mxu0 0.0
    %390 = vmatprep.subr.mxu0 0.0
    %391 = vmatpush2.xpose.msra.mxu0 0.0
    %392 = vmatprep.subr.mxu0 0.0
    %393 = vmatpush2.xpose.msra.mxu0 0.0
    %394 = vmatprep.mubr.f32.mxu0 %v133
    %395 = vmatmul.mubr.f32.gmra.mxu0 %v129
    %v396 = vpop.f32.mrf.mxu0
    %v397 = vadd.f32 %v327, %v396
    %v398 = vpop.f32.mrf.mxu0
    %399 = vdwg.mxu0
    %400 = vmatprep.subr.mxu0 0.0
    %401 = vmatpush1.xpose.msra.mxu0 0.0
    %402 = vmatprep.subr.mxu0 0.0
    %403 = vmatpush1.xpose.msra.mxu0 0.0
    %404 = vmatprep.subr.mxu0 0.0
    %405 = vmatpush1.xpose.msra.mxu0 0.0
    %406 = vmatprep.subr.mxu0 0.0
    %407 = vmatpush1.xpose.msra.mxu0 0.0
    %408 = vmatprep.subr.mxu0 0.0
    %409 = vmatpush1.xpose.msra.mxu0 0.0
    %410 = vmatprep.subr.mxu0 0.0
    %411 = vmatpush1.xpose.msra.mxu0 0.0
    %412 = vmatprep.subr.mxu0 0.0
    %413 = vmatpush1.xpose.msra.mxu0 0.0
    %414 = vmatprep.subr.mxu0 0.0
    %415 = vmatpush1.xpose.msra.mxu0 0.0
    %416 = vmatprep.subr.mxu0 0.0
    %417 = vmatpush1.xpose.msra.mxu0 0.0
    %418 = vmatprep.subr.mxu0 0.0
    %419 = vmatpush1.xpose.msra.mxu0 0.0
    %420 = vmatprep.subr.mxu0 0.0
    %421 = vmatpush1.xpose.msra.mxu0 0.0
    %422 = vmatprep.subr.mxu0 0.0
    %423 = vmatpush1.xpose.msra.mxu0 0.0
    %424 = vmatprep.subr.mxu0 %v98
    %425 = vmatpush1.xpose.msra.mxu0 %v97
    %426 = vmatprep.subr.mxu0 %v82
    %427 = vmatpush1.xpose.msra.mxu0 %v81
    %428 = vmatprep.subr.mxu0 %v66
    %429 = vmatpush1.xpose.msra.mxu0 %v65
    %430 = vmatprep.subr.mxu0 %v50
    %431 = vmatpush1.xpose.msra.mxu0 %v49
    %432 = vmatprep.subr.mxu0 0.0
    %433 = vmatpush2.xpose.msra.mxu0 0.0
    %434 = vmatprep.subr.mxu0 0.0
    %435 = vmatpush2.xpose.msra.mxu0 0.0
    %436 = vmatprep.subr.mxu0 0.0
    %437 = vmatpush2.xpose.msra.mxu0 0.0
    %438 = vmatprep.subr.mxu0 0.0
    %439 = vmatpush2.xpose.msra.mxu0 0.0
    %440 = vmatprep.subr.mxu0 0.0
    %441 = vmatpush2.xpose.msra.mxu0 0.0
    %442 = vmatprep.subr.mxu0 0.0
    %443 = vmatpush2.xpose.msra.mxu0 0.0
    %444 = vmatprep.subr.mxu0 0.0
    %445 = vmatpush2.xpose.msra.mxu0 0.0
    %446 = vmatprep.subr.mxu0 0.0
    %447 = vmatpush2.xpose.msra.mxu0 0.0
    %448 = vmatprep.subr.mxu0 0.0
    %449 = vmatpush2.xpose.msra.mxu0 0.0
    %450 = vmatprep.subr.mxu0 0.0
    %451 = vmatpush2.xpose.msra.mxu0 0.0
    %452 = vmatprep.subr.mxu0 0.0
    %453 = vmatpush2.xpose.msra.mxu0 0.0
    %454 = vmatprep.subr.mxu0 0.0
    %455 = vmatpush2.xpose.msra.mxu0 0.0
    %456 = vmatprep.subr.mxu0 0.0
    %457 = vmatpush2.xpose.msra.mxu0 0.0
    %458 = vmatprep.subr.mxu0 0.0
    %459 = vmatpush2.xpose.msra.mxu0 0.0
    %460 = vmatprep.subr.mxu0 0.0
    %461 = vmatpush2.xpose.msra.mxu0 0.0
    %462 = vmatprep.subr.mxu0 0.0
    %463 = vmatpush2.xpose.msra.mxu0 0.0
    %464 = vmatprep.mubr.f32.mxu0 %v141
    %465 = vmatmul.mubr.f32.gmra.mxu0 %v137
    %v466 = vpop.f32.mrf.mxu0
    %v467 = vadd.f32 %v397, %v466
    %v468 = vpop.f32.mrf.mxu0
    %469 = vdwg.mxu0
    %470 = vmatprep.subr.mxu0 0.0
    %471 = vmatpush1.xpose.msra.mxu0 0.0
    %472 = vmatprep.subr.mxu0 0.0
    %473 = vmatpush1.xpose.msra.mxu0 0.0
    %474 = vmatprep.subr.mxu0 0.0
    %475 = vmatpush1.xpose.msra.mxu0 0.0
    %476 = vmatprep.subr.mxu0 0.0
    %477 = vmatpush1.xpose.msra.mxu0 0.0
    %478 = vmatprep.subr.mxu0 0.0
    %479 = vmatpush1.xpose.msra.mxu0 0.0
    %480 = vmatprep.subr.mxu0 0.0
    %481 = vmatpush1.xpose.msra.mxu0 0.0
    %482 = vmatprep.subr.mxu0 0.0
    %483 = vmatpush1.xpose.msra.mxu0 0.0
    %484 = vmatprep.subr.mxu0 0.0
    %485 = vmatpush1.xpose.msra.mxu0 0.0
    %486 = vmatprep.subr.mxu0 0.0
    %487 = vmatpush1.xpose.msra.mxu0 0.0
    %488 = vmatprep.subr.mxu0 0.0
    %489 = vmatpush1.xpose.msra.mxu0 0.0
    %490 = vmatprep.subr.mxu0 0.0
    %491 = vmatpush1.xpose.msra.mxu0 0.0
    %492 = vmatprep.subr.mxu0 0.0
    %493 = vmatpush1.xpose.msra.mxu0 0.0
    %494 = vmatprep.subr.mxu0 %v100
    %495 = vmatpush1.xpose.msra.mxu0 %v99
    %496 = vmatprep.subr.mxu0 %v84
    %497 = vmatpush1.xpose.msra.mxu0 %v83
    %498 = vmatprep.subr.mxu0 %v68
    %499 = vmatpush1.xpose.msra.mxu0 %v67
    %500 = vmatprep.subr.mxu0 %v52
    %501 = vmatpush1.xpose.msra.mxu0 %v51
    %502 = vmatprep.subr.mxu0 0.0
    %503 = vmatpush2.xpose.msra.mxu0 0.0
    %504 = vmatprep.subr.mxu0 0.0
    %505 = vmatpush2.xpose.msra.mxu0 0.0
    %506 = vmatprep.subr.mxu0 0.0
    %507 = vmatpush2.xpose.msra.mxu0 0.0
    %508 = vmatprep.subr.mxu0 0.0
    %509 = vmatpush2.xpose.msra.mxu0 0.0
    %510 = vmatprep.subr.mxu0 0.0
    %511 = vmatpush2.xpose.msra.mxu0 0.0
    %512 = vmatprep.subr.mxu0 0.0
    %513 = vmatpush2.xpose.msra.mxu0 0.0
    %514 = vmatprep.subr.mxu0 0.0
    %515 = vmatpush2.xpose.msra.mxu0 0.0
    %516 = vmatprep.subr.mxu0 0.0
    %517 = vmatpush2.xpose.msra.mxu0 0.0
    %518 = vmatprep.subr.mxu0 0.0
    %519 = vmatpush2.xpose.msra.mxu0 0.0
    %520 = vmatprep.subr.mxu0 0.0
    %521 = vmatpush2.xpose.msra.mxu0 0.0
    %522 = vmatprep.subr.mxu0 0.0
    %523 = vmatpush2.xpose.msra.mxu0 0.0
    %524 = vmatprep.subr.mxu0 0.0
    %525 = vmatpush2.xpose.msra.mxu0 0.0
    %526 = vmatprep.subr.mxu0 0.0
    %527 = vmatpush2.xpose.msra.mxu0 0.0
    %528 = vmatprep.subr.mxu0 0.0
    %529 = vmatpush2.xpose.msra.mxu0 0.0
    %530 = vmatprep.subr.mxu0 0.0
    %531 = vmatpush2.xpose.msra.mxu0 0.0
    %532 = vmatprep.subr.mxu0 0.0
    %533 = vmatpush2.xpose.msra.mxu0 0.0
    %534 = vmatprep.mubr.f32.mxu0 %v149
    %535 = vmatmul.mubr.f32.gmra.mxu0 %v145
    %v536 = vpop.f32.mrf.mxu0
    %v537 = vadd.f32 %v467, %v536
    %v538 = vpop.f32.mrf.mxu0
    %539 = vdwg.mxu0
    %540 = vmatprep.subr.mxu0 0.0
    %541 = vmatpush1.xpose.msra.mxu0 0.0
    %542 = vmatprep.subr.mxu0 0.0
    %543 = vmatpush1.xpose.msra.mxu0 0.0
    %544 = vmatprep.subr.mxu0 0.0
    %545 = vmatpush1.xpose.msra.mxu0 0.0
    %546 = vmatprep.subr.mxu0 0.0
    %547 = vmatpush1.xpose.msra.mxu0 0.0
    %548 = vmatprep.subr.mxu0 0.0
    %549 = vmatpush1.xpose.msra.mxu0 0.0
    %550 = vmatprep.subr.mxu0 0.0
    %551 = vmatpush1.xpose.msra.mxu0 0.0
    %552 = vmatprep.subr.mxu0 0.0
    %553 = vmatpush1.xpose.msra.mxu0 0.0
    %554 = vmatprep.subr.mxu0 0.0
    %555 = vmatpush1.xpose.msra.mxu0 0.0
    %556 = vmatprep.subr.mxu0 0.0
    %557 = vmatpush1.xpose.msra.mxu0 0.0
    %558 = vmatprep.subr.mxu0 0.0
    %559 = vmatpush1.xpose.msra.mxu0 0.0
    %560 = vmatprep.subr.mxu0 0.0
    %561 = vmatpush1.xpose.msra.mxu0 0.0
    %562 = vmatprep.subr.mxu0 0.0
    %563 = vmatpush1.xpose.msra.mxu0 0.0
    %564 = vmatprep.subr.mxu0 %v102
    %565 = vmatpush1.xpose.msra.mxu0 %v101
    %566 = vmatprep.subr.mxu0 %v86
    %567 = vmatpush1.xpose.msra.mxu0 %v85
    %568 = vmatprep.subr.mxu0 %v70
    %569 = vmatpush1.xpose.msra.mxu0 %v69
    %570 = vmatprep.subr.mxu0 %v54
    %571 = vmatpush1.xpose.msra.mxu0 %v53
    %572 = vmatprep.subr.mxu0 0.0
    %573 = vmatpush2.xpose.msra.mxu0 0.0
    %574 = vmatprep.subr.mxu0 0.0
    %575 = vmatpush2.xpose.msra.mxu0 0.0
    %576 = vmatprep.subr.mxu0 0.0
    %577 = vmatpush2.xpose.msra.mxu0 0.0
    %578 = vmatprep.subr.mxu0 0.0
    %579 = vmatpush2.xpose.msra.mxu0 0.0
    %580 = vmatprep.subr.mxu0 0.0
    %581 = vmatpush2.xpose.msra.mxu0 0.0
    %582 = vmatprep.subr.mxu0 0.0
    %583 = vmatpush2.xpose.msra.mxu0 0.0
    %584 = vmatprep.subr.mxu0 0.0
    %585 = vmatpush2.xpose.msra.mxu0 0.0
    %586 = vmatprep.subr.mxu0 0.0
    %587 = vmatpush2.xpose.msra.mxu0 0.0
    %588 = vmatprep.subr.mxu0 0.0
    %589 = vmatpush2.xpose.msra.mxu0 0.0
    %590 = vmatprep.subr.mxu0 0.0
    %591 = vmatpush2.xpose.msra.mxu0 0.0
    %592 = vmatprep.subr.mxu0 0.0
    %593 = vmatpush2.xpose.msra.mxu0 0.0
    %594 = vmatprep.subr.mxu0 0.0
    %595 = vmatpush2.xpose.msra.mxu0 0.0
    %596 = vmatprep.subr.mxu0 0.0
    %597 = vmatpush2.xpose.msra.mxu0 0.0
    %598 = vmatprep.subr.mxu0 0.0
    %599 = vmatpush2.xpose.msra.mxu0 0.0
    %600 = vmatprep.subr.mxu0 0.0
    %601 = vmatpush2.xpose.msra.mxu0 0.0
    %602 = vmatprep.subr.mxu0 0.0
    %603 = vmatpush2.xpose.msra.mxu0 0.0
    %604 = vmatprep.mubr.f32.mxu0 %v157
    %605 = vmatmul.mubr.f32.gmra.mxu0 %v153
    %v606 = vpop.f32.mrf.mxu0
    %v607 = vadd.f32 %v537, %v606
    %v608 = vpop.f32.mrf.mxu0
    %609 = vdwg.mxu0
    %610 = vmatprep.subr.mxu0 0.0
    %611 = vmatpush1.xpose.msra.mxu0 0.0
    %612 = vmatprep.subr.mxu0 0.0
    %613 = vmatpush1.xpose.msra.mxu0 0.0
    %614 = vmatprep.subr.mxu0 0.0
    %615 = vmatpush1.xpose.msra.mxu0 0.0
    %616 = vmatprep.subr.mxu0 0.0
    %617 = vmatpush1.xpose.msra.mxu0 0.0
    %618 = vmatprep.subr.mxu0 0.0
    %619 = vmatpush1.xpose.msra.mxu0 0.0
    %620 = vmatprep.subr.mxu0 0.0
    %621 = vmatpush1.xpose.msra.mxu0 0.0
    %622 = vmatprep.subr.mxu0 0.0
    %623 = vmatpush1.xpose.msra.mxu0 0.0
    %624 = vmatprep.subr.mxu0 0.0
    %625 = vmatpush1.xpose.msra.mxu0 0.0
    %626 = vmatprep.subr.mxu0 0.0
    %627 = vmatpush1.xpose.msra.mxu0 0.0
    %628 = vmatprep.subr.mxu0 0.0
    %629 = vmatpush1.xpose.msra.mxu0 0.0
    %630 = vmatprep.subr.mxu0 0.0
    %631 = vmatpush1.xpose.msra.mxu0 0.0
    %632 = vmatprep.subr.mxu0 0.0
    %633 = vmatpush1.xpose.msra.mxu0 0.0
    %634 = vmatprep.subr.mxu0 %v104
    %635 = vmatpush1.xpose.msra.mxu0 %v103
    %636 = vmatprep.subr.mxu0 %v88
    %637 = vmatpush1.xpose.msra.mxu0 %v87
    %638 = vmatprep.subr.mxu0 %v72
    %639 = vmatpush1.xpose.msra.mxu0 %v71
    %640 = vmatprep.subr.mxu0 %v56
    %641 = vmatpush1.xpose.msra.mxu0 %v55
    %642 = vmatprep.subr.mxu0 0.0
    %643 = vmatpush2.xpose.msra.mxu0 0.0
    %644 = vmatprep.subr.mxu0 0.0
    %645 = vmatpush2.xpose.msra.mxu0 0.0
    %646 = vmatprep.subr.mxu0 0.0
    %647 = vmatpush2.xpose.msra.mxu0 0.0
    %648 = vmatprep.subr.mxu0 0.0
    %649 = vmatpush2.xpose.msra.mxu0 0.0
    %650 = vmatprep.subr.mxu0 0.0
    %651 = vmatpush2.xpose.msra.mxu0 0.0
    %652 = vmatprep.subr.mxu0 0.0
    %653 = vmatpush2.xpose.msra.mxu0 0.0
    %654 = vmatprep.subr.mxu0 0.0
    %655 = vmatpush2.xpose.msra.mxu0 0.0
    %656 = vmatprep.subr.mxu0 0.0
    %657 = vmatpush2.xpose.msra.mxu0 0.0
    %658 = vmatprep.subr.mxu0 0.0
    %659 = vmatpush2.xpose.msra.mxu0 0.0
    %660 = vmatprep.subr.mxu0 0.0
    %661 = vmatpush2.xpose.msra.mxu0 0.0
    %662 = vmatprep.subr.mxu0 0.0
    %663 = vmatpush2.xpose.msra.mxu0 0.0
    %664 = vmatprep.subr.mxu0 0.0
    %665 = vmatpush2.xpose.msra.mxu0 0.0
    %666 = vmatprep.subr.mxu0 0.0
    %667 = vmatpush2.xpose.msra.mxu0 0.0
    %668 = vmatprep.subr.mxu0 0.0
    %669 = vmatpush2.xpose.msra.mxu0 0.0
    %670 = vmatprep.subr.mxu0 0.0
    %671 = vmatpush2.xpose.msra.mxu0 0.0
    %672 = vmatprep.subr.mxu0 0.0
    %673 = vmatpush2.xpose.msra.mxu0 0.0
    %674 = vmatprep.mubr.f32.mxu0 %v165
    %675 = vmatmul.mubr.f32.gmra.mxu0 %v161
    %v676 = vpop.f32.mrf.mxu0
    %v677 = vadd.f32 %v607, %v676
    %v678 = vpop.f32.mrf.mxu0
    %679 = vdwg.mxu0
    %680 = vmatprep.subr.mxu0 0.0
    %681 = vmatpush1.xpose.msra.mxu0 0.0
    %682 = vmatprep.subr.mxu0 0.0
    %683 = vmatpush1.xpose.msra.mxu0 0.0
    %684 = vmatprep.subr.mxu0 0.0
    %685 = vmatpush1.xpose.msra.mxu0 0.0
    %686 = vmatprep.subr.mxu0 0.0
    %687 = vmatpush1.xpose.msra.mxu0 0.0
    %688 = vmatprep.subr.mxu0 0.0
    %689 = vmatpush1.xpose.msra.mxu0 0.0
    %690 = vmatprep.subr.mxu0 0.0
    %691 = vmatpush1.xpose.msra.mxu0 0.0
    %692 = vmatprep.subr.mxu0 0.0
    %693 = vmatpush1.xpose.msra.mxu0 0.0
    %694 = vmatprep.subr.mxu0 0.0
    %695 = vmatpush1.xpose.msra.mxu0 0.0
    %696 = vmatprep.subr.mxu0 0.0
    %697 = vmatpush1.xpose.msra.mxu0 0.0
    %698 = vmatprep.subr.mxu0 0.0
    %699 = vmatpush1.xpose.msra.mxu0 0.0
    %700 = vmatprep.subr.mxu0 0.0
    %701 = vmatpush1.xpose.msra.mxu0 0.0
    %702 = vmatprep.subr.mxu0 0.0
    %703 = vmatpush1.xpose.msra.mxu0 0.0
    %704 = vmatprep.subr.mxu0 %v106
    %705 = vmatpush1.xpose.msra.mxu0 %v105
    %706 = vmatprep.subr.mxu0 %v90
    %707 = vmatpush1.xpose.msra.mxu0 %v89
    %708 = vmatprep.subr.mxu0 %v74
    %709 = vmatpush1.xpose.msra.mxu0 %v73
    %710 = vmatprep.subr.mxu0 %v58
    %711 = vmatpush1.xpose.msra.mxu0 %v57
    %712 = vmatprep.subr.mxu0 0.0
    %713 = vmatpush2.xpose.msra.mxu0 0.0
    %714 = vmatprep.subr.mxu0 0.0
    %715 = vmatpush2.xpose.msra.mxu0 0.0
    %716 = vmatprep.subr.mxu0 0.0
    %717 = vmatpush2.xpose.msra.mxu0 0.0
    %718 = vmatprep.subr.mxu0 0.0
    %719 = vmatpush2.xpose.msra.mxu0 0.0
    %720 = vmatprep.subr.mxu0 0.0
    %721 = vmatpush2.xpose.msra.mxu0 0.0
    %722 = vmatprep.subr.mxu0 0.0
    %723 = vmatpush2.xpose.msra.mxu0 0.0
    %724 = vmatprep.subr.mxu0 0.0
    %725 = vmatpush2.xpose.msra.mxu0 0.0
    %726 = vmatprep.subr.mxu0 0.0
    %727 = vmatpush2.xpose.msra.mxu0 0.0
    %728 = vmatprep.subr.mxu0 0.0
    %729 = vmatpush2.xpose.msra.mxu0 0.0
    %730 = vmatprep.subr.mxu0 0.0
    %731 = vmatpush2.xpose.msra.mxu0 0.0
    %732 = vmatprep.subr.mxu0 0.0
    %733 = vmatpush2.xpose.msra.mxu0 0.0
    %734 = vmatprep.subr.mxu0 0.0
    %735 = vmatpush2.xpose.msra.mxu0 0.0
    %736 = vmatprep.subr.mxu0 0.0
    %737 = vmatpush2.xpose.msra.mxu0 0.0
    %738 = vmatprep.subr.mxu0 0.0
    %739 = vmatpush2.xpose.msra.mxu0 0.0
    %740 = vmatprep.subr.mxu0 0.0
    %741 = vmatpush2.xpose.msra.mxu0 0.0
    %742 = vmatprep.subr.mxu0 0.0
    %743 = vmatpush2.xpose.msra.mxu0 0.0
    %744 = vmatprep.mubr.f32.mxu0 %v173
    %745 = vmatmul.mubr.f32.gmra.mxu0 %v169
    %v746 = vpop.f32.mrf.mxu0
    %v747 = vadd.f32 %v677, %v746
    %v748 = vpop.f32.mrf.mxu0
    %749 = vdwg.mxu0
    %vm750 = vcmask 253952
    %751 = vst.msk [vmem:[#allocation7] sm:$0x1] %vm750, %v747
    // Predicated region
    $region22: #{tpu_custom_call.1} parent=1 // pred_check
      _
    $region23: #{tpu_custom_call.1} parent=1 // pred_check_branch
      %753 = sbr.rel (0) target = $region25
    $region24: #{tpu_custom_call.1} parent=1 // pred_region
      %s755 = ssub.s32 16, 16
      %756 = vsyncadd [#allocation4], %s755
      %s758 = sshll.u32 [#allocation7], 4
      %s759 = int_to_ptr.vmem [resolvable:$true] %s758
      %761 = dma.vmem_to_hbm [thread:$0]  %s759, 16, %s3, [#allocation4]
    $region25: #{tpu_custom_call.1} parent=1 // pred_fallthru
      _
    // Predicated region
    $region26: #{tpu_custom_call.1} parent=1 // pred_check
      _
    $region27: #{tpu_custom_call.1} parent=1 // pred_check_branch
      %763 = sbr.rel (0) target = $region29
    $region28: #{tpu_custom_call.1} parent=1 // pred_region
      %764 = dma.done [#allocation4], 16
    $region29: #{tpu_custom_call.1} parent=1 // pred_fallthru
      _
    %765 = vsyncpa [#allocation3], 1
    %766 = vsyncpa [#allocation6], 1
    %767 = vsyncpa [#allocation4], 1

</llo_original>
